<compile_context>
chip_gen: v5e
topology: v5e:2x2
jax: 0.10.0
libtpu: 0.0.40
codegen_flags: <defaults>
</compile_context>

<pallas_src>
import functools
import math

import jax
import jax.numpy as jnp
from jax.experimental import pallas as pl
from jax.experimental.pallas import tpu as pltpu


# ---------------------------------------------------------------------------
# Parameters
# ---------------------------------------------------------------------------

def make_params(key, dim, mlp_ratio=4):
    """Deterministic synthetic parameters (shapes match nn.Module __init__).
    Linear weights are stored pre-transposed as (in_features, out_features)."""
    ks = jax.random.split(key, 6)
    hidden = dim * mlp_ratio
    s = 0.1
    return {
        "ln_g": 1.0 + s * jax.random.normal(ks[0], (dim,), jnp.float32),
        "ln_b": s * jax.random.normal(ks[1], (dim,), jnp.float32),
        "w1":   s * jax.random.normal(ks[2], (dim, hidden), jnp.float32),
        "b1":   s * jax.random.normal(ks[3], (hidden,), jnp.float32),
        "w2":   s * jax.random.normal(ks[4], (hidden, dim), jnp.float32),
        "b2":   s * jax.random.normal(ks[5], (dim,), jnp.float32),
    }


def prepare_params(params, matmul_dtype=jnp.bfloat16):
    """One-time host-side prep: reshape biases to (1, F), cast matmul weights
    to `matmul_dtype`.  Call ONCE and reuse -> no per-forward f32->bf16
    convert traffic (pure overhead the kernel never sees)."""
    dim = params["w1"].shape[0]
    hidden = params["w1"].shape[1]
    return {
        "ln_g": params["ln_g"].reshape(1, dim).astype(jnp.float32),
        "ln_b": params["ln_b"].reshape(1, dim).astype(jnp.float32),
        "w1":   params["w1"].astype(matmul_dtype),
        "b1":   params["b1"].reshape(1, hidden).astype(jnp.float32),
        "w2":   params["w2"].astype(matmul_dtype),
        "b2":   params["b2"].reshape(1, dim).astype(jnp.float32),
    }


# ---------------------------------------------------------------------------
# Kernels
# ---------------------------------------------------------------------------

def _gelu(h, approximate):
    if approximate:
        # tanh-approx GELU -> EUP slot (frees the VALU on v6e/v7x).
        # Numerics deviation from nn.GELU() default; opt-in only.
        return jax.nn.gelu(h, approximate=True)
    # Exact erf GELU, matching nn.GELU() default.
    return 0.5 * h * (1.0 + jax.lax.erf(h * (1.0 / math.sqrt(2.0))))


def _layernorm_f32(x, ln_g, ln_b):
    mu = jnp.mean(x, axis=-1, keepdims=True)
    xc = x - mu
    var = jnp.mean(xc * xc, axis=-1, keepdims=True)
    return xc * jax.lax.rsqrt(var + 1e-5) * ln_g + ln_b


def _mlp_kernel_resident(x_ref, ln_g_ref, ln_b_ref, w1_ref, b1_ref,
                         w2_ref, b2_ref, o_ref, *, approximate_gelu):
    """Path A: weights fully VMEM-resident (single-buffered), row-tiled grid."""
    x = x_ref[...].astype(jnp.float32)                       # (tm, D)
    xn = _layernorm_f32(x, ln_g_ref[...], ln_b_ref[...])

    h = jnp.dot(xn.astype(w1_ref.dtype), w1_ref[...],
                preferred_element_type=jnp.float32) + b1_ref[...]
    h = _gelu(h, approximate_gelu)
    y = jnp.dot(h.astype(w2_ref.dtype), w2_ref[...],
                preferred_element_type=jnp.float32) + b2_ref[...]
    o_ref[...] = y.astype(o_ref.dtype)


def _mlp_kernel_htiled(x_ref, ln_g_ref, ln_b_ref, w1_ref, b1_ref,
                       w2_ref, b2_ref, o_ref, xn_scr, acc_scr, *,
                       approximate_gelu):
    """Path B: hidden-dim streaming (grid=(row_tiles, hidden_chunks)).
    Weights arrive as (D, th) / (th, D) slices; second matmul accumulates
    into an f32 VMEM scratch (P3 init/finalize)."""
    k = pl.program_id(1)

    @pl.when(k == 0)
    def _():
        x = x_ref[...].astype(jnp.float32)
        xn = _layernorm_f32(x, ln_g_ref[...], ln_b_ref[...])
        xn_scr[...] = xn.astype(xn_scr.dtype)          # matmul-dtype copy
        acc_scr[...] = jnp.zeros_like(acc_scr)

    h = jnp.dot(xn_scr[...], w1_ref[...],
                preferred_element_type=jnp.float32) + b1_ref[...]
    h = _gelu(h, approximate_gelu)
    acc_scr[...] += jnp.dot(h.astype(w2_ref.dtype), w2_ref[...],
                            preferred_element_type=jnp.float32)

    @pl.when(k == pl.num_programs(1) - 1)
    def _():
        o_ref[...] = (acc_scr[...] + b2_ref[...]).astype(o_ref.dtype)


# ---------------------------------------------------------------------------
# Wrapper
# ---------------------------------------------------------------------------

def _round_up(a, b):
    return ((a + b - 1) // b) * b


def mlp_subblock_forward(x, prepared, *, tile_m=256, tile_h=None,
                         approximate_gelu=False):
    """Pallas forward of MLPSubblock: Linear2(GELU(Linear1(LayerNorm(x)))).

    prepared : output of prepare_params() (bf16 weights, (1,F) biases).
    tile_m   : row tile over flattened tokens (v5e: 128-256; v6e can use 512).
    tile_h   : if set (divides hidden, multiple of 128) stream the weights
               over a second "arbitrary" grid axis instead of keeping them
               VMEM-resident (use on v7x / very large hidden dims).
    """
    orig_shape = x.shape
    D = orig_shape[-1]
    hidden = prepared["w1"].shape[-1]
    M = math.prod(orig_shape[:-1])
    xm = x.reshape(M, D)

    # Row tiling: never collapse to a single grid step; pad M up instead.
    tm = _round_up(min(tile_m, _round_up(M, 8)), 8)
    m_pad = _round_up(M, tm)
    if m_pad != M:
        xm = jnp.pad(xm, ((0, m_pad - M), (0, 0)))   # padded rows discarded
    n_row_tiles = m_pad // tm

    ln_g, ln_b = prepared["ln_g"], prepared["ln_b"]
    w1, b1 = prepared["w1"], prepared["b1"]
    w2, b2 = prepared["w2"], prepared["b2"]
    param_bytes = sum(int(a.size) * a.dtype.itemsize
                      for a in (ln_g, ln_b, w1, b1, w2, b2))
    out_dtype = x.dtype
    x_isz = xm.dtype.itemsize
    o_isz = jnp.dtype(out_dtype).itemsize
    w_isz = w1.dtype.itemsize

    if tile_h is None or tile_h >= hidden:
        # ---------------- Path A: resident, single-buffered weights --------
        row_spec = pl.BlockSpec((tm, D), lambda i: (i, 0))

        def const_spec(a):
            # Constant index_map -> fetched once; Buffered(1) -> no wasted
            # second VMEM copy of each parameter block.
            return pl.BlockSpec(a.shape, lambda i: (0,) * a.ndim,
                                pipeline_mode=pl.Buffered(1))

        grid = (n_row_tiles,)
        in_specs = [row_spec] + [const_spec(a)
                                 for a in (ln_g, ln_b, w1, b1, w2, b2)]
        out_specs = row_spec
        dim_sem = ("parallel",)
        scratch = []
        kernel = functools.partial(_mlp_kernel_resident,
                                   approximate_gelu=approximate_gelu)
        needed = (2 * tm * D * x_isz            # double-buffered input rows
                  + 2 * tm * D * o_isz          # double-buffered output rows
                  + param_bytes                 # single-buffered params
                  + tm * hidden * 4             # f32 h intermediate
                  + 2 * tm * D * 4)             # f32 xn / y intermediates
    else:
        # ---------------- Path B: stream weights over hidden chunks --------
        assert hidden % tile_h == 0, "tile_h must divide hidden"
        th = tile_h
        n_h = hidden // th

        def const_spec(a):
            return pl.BlockSpec(a.shape, lambda i, k: (0,) * a.ndim,
                                pipeline_mode=pl.Buffered(1))

        grid = (n_row_tiles, n_h)
        in_specs = [
            pl.BlockSpec((tm, D), lambda i, k: (i, 0)),        # x rows
            const_spec(ln_g),
            const_spec(ln_b),
            pl.BlockSpec((D, th), lambda i, k: (0, k)),        # w1 chunk
            pl.BlockSpec((1, th), lambda i, k: (0, k)),        # b1 chunk
            pl.BlockSpec((th, D), lambda i, k: (k, 0)),        # w2 chunk
            const_spec(b2),
        ]
        out_specs = pl.BlockSpec((tm, D), lambda i, k: (i, 0))
        dim_sem = ("parallel", "arbitrary")
        scratch = [pltpu.VMEM((tm, D), w1.dtype),      # LayerNorm'd rows
                   pltpu.VMEM((tm, D), jnp.float32)]   # f32 accumulator
        kernel = functools.partial(_mlp_kernel_htiled,
                                   approximate_gelu=approximate_gelu)
        needed = (2 * tm * D * x_isz + 2 * tm * D * o_isz
                  + (int(ln_g.size) + int(ln_b.size) + int(b2.size)) * 4
                  + 2 * (D * th + th * D) * w_isz      # double-buffered chunks
                  + 2 * th * 4                          # b1 chunks
                  + tm * th * 4                         # f32 h chunk
                  + tm * D * (w_isz + 4))               # scratches

    # Explicit VMEM budget (headroom + floor), capped at v7x physical VMEM.
    vmem_limit = int(min(max(needed * 3 // 2 + (2 << 20), 16 << 20), 64 << 20))

    out = pl.pallas_call(
        kernel,
        out_shape=jax.ShapeDtypeStruct((m_pad, D), out_dtype),
        grid_spec=pltpu.PrefetchScalarGridSpec(
            num_scalar_prefetch=0,
            grid=grid,
            in_specs=in_specs,
            out_specs=out_specs,
            scratch_shapes=scratch,
        ),
        compiler_params=pltpu.CompilerParams(
            dimension_semantics=dim_sem,
            vmem_limit_bytes=vmem_limit),
    )(xm, ln_g, ln_b, w1, b1, w2, b2)

    if m_pad != M:
        out = out[:M]
    return out.reshape(orig_shape)


# ---------------------------------------------------------------------------
# References
# ---------------------------------------------------------------------------

def reference_forward(x, p):
    """Pure-JAX f32 reference reproducing the PyTorch module semantics."""
    mu = x.mean(-1, keepdims=True)
    var = ((x - mu) ** 2).mean(-1, keepdims=True)
    xn = (x - mu) / jnp.sqrt(var + 1e-5) * p["ln_g"] + p["ln_b"]
    h = xn @ p["w1"] + p["b1"]
    h = jax.nn.gelu(h, approximate=False)
    return h @ p["w2"] + p["b2"]


def reference_forward_matched(x, prep):
    """Reference using the SAME (possibly bf16) weights as the kernel with f32
    accumulation -> allows a tight numerical check independent of the bf16
    numerics deviation."""
    mu = x.mean(-1, keepdims=True)
    var = ((x - mu) ** 2).mean(-1, keepdims=True)
    xn = (x - mu) * jax.lax.rsqrt(var + 1e-5) * prep["ln_g"] + prep["ln_b"]
    h = jnp.dot(xn.astype(prep["w1"].dtype), prep["w1"],
                preferred_element_type=jnp.float32) + prep["b1"]
    h = jax.nn.gelu(h, approximate=False)
    return jnp.dot(h.astype(prep["w2"].dtype), prep["w2"],
                   preferred_element_type=jnp.float32) + prep["b2"]


# ---------------------------------------------------------------------------
# Demo / self-test (small shapes)
# ---------------------------------------------------------------------------

if __name__ == "__main__":
    # M = B*N = 18 tokens (not a multiple of 8) -> exercises the padding path.
    B, N, D, MLP_RATIO = 2, 9, 64, 4
    HIDDEN = D * MLP_RATIO  # 256

    key = jax.random.PRNGKey(0)
    kx, kp = jax.random.split(key)
    x = jax.random.normal(kx, (B, N, D), jnp.float32)
    params = make_params(kp, D, MLP_RATIO)
    prepared = prepare_params(params)            # one-time bf16 weight cast

    y_ref = reference_forward(x, params)
    y_ref_matched = reference_forward_matched(x, prepared)

    # Path A: resident, single-buffered weights (default; v5e/v6e).
    fwd_a = jax.jit(functools.partial(mlp_subblock_forward, tile_m=8))
    y_a = fwd_a(x, prepared)
    jax.block_until_ready(y_a)

    # Path B: hidden-dim streaming (v7x / large models); 2 chunks of 128 here.
    fwd_b = jax.jit(functools.partial(mlp_subblock_forward,
                                      tile_m=8, tile_h=128))
    y_b = fwd_b(x, prepared)
    jax.block_until_ready(y_b)

    assert y_a.shape == x.shape and y_b.shape == x.shape
    for name, y in (("resident", y_a), ("htiled", y_b)):
        # Tight check vs a reference using the same bf16 weights...
        err_m = jnp.max(jnp.abs(y - y_ref_matched))
        assert jnp.allclose(y, y_ref_matched, rtol=2e-3, atol=2e-3), (
            f"{name} mismatch vs matched ref: max abs err {err_m}")
        # ...and a looser check vs the exact f32 PyTorch-equivalent reference
        # (bf16 matmul operands are a deliberate numerics deviation).
        err = jnp.max(jnp.abs(y - y_ref))
        assert jnp.allclose(y, y_ref, rtol=2e-2, atol=2e-2), (
            f"{name} mismatch vs f32 ref: max abs err {err}")

    print("KERNEL_OK")
</pallas_src>

<mosaic_0001>
module attributes {stable_mosaic.version = 11 : i64} {
  func.func @_mlp_kernel_resident(%arg0: i32, %arg1: memref<8x64xf32, #tpu.memory_space<vmem>>, %arg2: memref<1x64xf32, #tpu.memory_space<vmem>>, %arg3: memref<1x64xf32, #tpu.memory_space<vmem>>, %arg4: memref<64x256xbf16, #tpu.memory_space<vmem>>, %arg5: memref<1x256xf32, #tpu.memory_space<vmem>>, %arg6: memref<256x64xbf16, #tpu.memory_space<vmem>>, %arg7: memref<1x64xf32, #tpu.memory_space<vmem>>, %arg8: memref<8x64xf32, #tpu.memory_space<vmem>>) attributes {dimension_semantics = [#tpu.dimension_semantics<parallel>], iteration_bounds = array<i64: 3>, scalar_prefetch = 0 : i64, scratch_operands = 0 : i64, tpu.core_type = #tpu.core_type<tc>, window_params = [{transform_indices = @transform_0, window_bounds = array<i64: 8, 64>}, {pipeline_mode = #tpu.pipeline_mode<synchronous>, transform_indices = @transform_1, window_bounds = array<i64: 1, 64>}, {pipeline_mode = #tpu.pipeline_mode<synchronous>, transform_indices = @transform_2, window_bounds = array<i64: 1, 64>}, {pipeline_mode = #tpu.pipeline_mode<synchronous>, transform_indices = @transform_3, window_bounds = array<i64: 64, 256>}, {pipeline_mode = #tpu.pipeline_mode<synchronous>, transform_indices = @transform_4, window_bounds = array<i64: 1, 256>}, {pipeline_mode = #tpu.pipeline_mode<synchronous>, transform_indices = @transform_5, window_bounds = array<i64: 256, 64>}, {pipeline_mode = #tpu.pipeline_mode<synchronous>, transform_indices = @transform_6, window_bounds = array<i64: 1, 64>}, {transform_indices = @transform_7, window_bounds = array<i64: 8, 64>}]} {
    %c0 = arith.constant 0 : index
    %c0_0 = arith.constant 0 : index
    %0 = vector.load %arg1[%c0, %c0_0] : memref<8x64xf32, #tpu.memory_space<vmem>>, vector<8x64xf32>
    %c0_1 = arith.constant 0 : index
    %c0_2 = arith.constant 0 : index
    %1 = vector.load %arg2[%c0_1, %c0_2] : memref<1x64xf32, #tpu.memory_space<vmem>>, vector<1x64xf32>
    %c0_3 = arith.constant 0 : index
    %c0_4 = arith.constant 0 : index
    %2 = vector.load %arg3[%c0_3, %c0_4] : memref<1x64xf32, #tpu.memory_space<vmem>>, vector<1x64xf32>
    %cst = arith.constant dense<0.000000e+00> : vector<8xf32>
    %3 = vector.multi_reduction <add>, %0, %cst [1] : vector<8x64xf32> to vector<8xf32>
    %4 = vector.shape_cast %3 : vector<8xf32> to vector<8x1xf32>
    %cst_5 = arith.constant 6.400000e+01 : f32
    %5 = vector.broadcast %cst_5 : f32 to vector<8x1xf32>
    %6 = arith.divf %4, %5 : vector<8x1xf32>
    %7 = vector.broadcast %6 : vector<8x1xf32> to vector<8x64xf32>
    %8 = arith.subf %0, %7 : vector<8x64xf32>
    %9 = arith.mulf %8, %8 : vector<8x64xf32>
    %cst_6 = arith.constant dense<0.000000e+00> : vector<8xf32>
    %10 = vector.multi_reduction <add>, %9, %cst_6 [1] : vector<8x64xf32> to vector<8xf32>
    %11 = vector.shape_cast %10 : vector<8xf32> to vector<8x1xf32>
    %cst_7 = arith.constant 6.400000e+01 : f32
    %12 = vector.broadcast %cst_7 : f32 to vector<8x1xf32>
    %13 = arith.divf %11, %12 : vector<8x1xf32>
    %cst_8 = arith.constant 9.99999974E-6 : f32
    %14 = vector.broadcast %cst_8 : f32 to vector<8x1xf32>
    %15 = arith.addf %13, %14 : vector<8x1xf32>
    %16 = math.rsqrt %15 : vector<8x1xf32>
    %17 = vector.broadcast %16 : vector<8x1xf32> to vector<8x64xf32>
    %18 = arith.mulf %8, %17 : vector<8x64xf32>
    %19 = vector.broadcast %1 : vector<1x64xf32> to vector<8x64xf32>
    %20 = arith.mulf %18, %19 : vector<8x64xf32>
    %21 = vector.broadcast %2 : vector<1x64xf32> to vector<8x64xf32>
    %22 = arith.addf %20, %21 : vector<8x64xf32>
    %23 = arith.truncf %22 : vector<8x64xf32> to vector<8x64xbf16>
    %c0_9 = arith.constant 0 : index
    %c0_10 = arith.constant 0 : index
    %24 = vector.load %arg4[%c0_9, %c0_10] : memref<64x256xbf16, #tpu.memory_space<vmem>>, vector<64x256xbf16>
    %cst_11 = arith.constant dense<0.000000e+00> : vector<8x256xf32>
    %25 = tpu.matmul %23, %24, %cst_11 {dimension_numbers = #tpu.dot_dimension_numbers<[1], [0], [0], [1], [0, 0, 1, 1], [], []>} : vector<8x64xbf16>, vector<64x256xbf16>, vector<8x256xf32> -> vector<8x256xf32>
    %c0_12 = arith.constant 0 : index
    %c0_13 = arith.constant 0 : index
    %26 = vector.load %arg5[%c0_12, %c0_13] : memref<1x256xf32, #tpu.memory_space<vmem>>, vector<1x256xf32>
    %27 = vector.broadcast %26 : vector<1x256xf32> to vector<8x256xf32>
    %28 = arith.addf %25, %27 : vector<8x256xf32>
    %cst_14 = arith.constant 5.000000e-01 : f32
    %29 = vector.broadcast %cst_14 : f32 to vector<8x256xf32>
    %30 = arith.mulf %29, %28 : vector<8x256xf32>
    %cst_15 = arith.constant 0.707106769 : f32
    %31 = vector.broadcast %cst_15 : f32 to vector<8x256xf32>
    %32 = arith.mulf %28, %31 : vector<8x256xf32>
    %33 = math.erf %32 : vector<8x256xf32>
    %cst_16 = arith.constant 1.000000e+00 : f32
    %34 = vector.broadcast %cst_16 : f32 to vector<8x256xf32>
    %35 = arith.addf %34, %33 : vector<8x256xf32>
    %36 = arith.mulf %30, %35 : vector<8x256xf32>
    %37 = arith.truncf %36 : vector<8x256xf32> to vector<8x256xbf16>
    %c0_17 = arith.constant 0 : index
    %c0_18 = arith.constant 0 : index
    %38 = vector.load %arg6[%c0_17, %c0_18] : memref<256x64xbf16, #tpu.memory_space<vmem>>, vector<256x64xbf16>
    %cst_19 = arith.constant dense<0.000000e+00> : vector<8x64xf32>
    %39 = tpu.matmul %37, %38, %cst_19 {dimension_numbers = #tpu.dot_dimension_numbers<[1], [0], [0], [1], [0, 0, 1, 1], [], []>} : vector<8x256xbf16>, vector<256x64xbf16>, vector<8x64xf32> -> vector<8x64xf32>
    %c0_20 = arith.constant 0 : index
    %c0_21 = arith.constant 0 : index
    %40 = vector.load %arg7[%c0_20, %c0_21] : memref<1x64xf32, #tpu.memory_space<vmem>>, vector<1x64xf32>
    %41 = vector.broadcast %40 : vector<1x64xf32> to vector<8x64xf32>
    %42 = arith.addf %39, %41 : vector<8x64xf32>
    %c0_22 = arith.constant 0 : index
    %c0_23 = arith.constant 0 : index
    %43 = vector.load %arg8[%c0_22, %c0_23] : memref<8x64xf32, #tpu.memory_space<vmem>>, vector<8x64xf32>
    tpu.vector_store %arg8[%c0_22, %c0_23], %42 {strides = array<i32>} : memref<8x64xf32, #tpu.memory_space<vmem>>, vector<8x64xf32>,
    return
  }
  func.func @transform_0(%arg0: i32) -> (i32, i32) {
    %c0_i32 = arith.constant 0 : i32
    %c0_i32_0 = arith.constant 0 : i32
    return %arg0, %c0_i32 : i32, i32
  }
  func.func @transform_1(%arg0: i32) -> (i32, i32) {
    %c0_i32 = arith.constant 0 : i32
    %c0_i32_0 = arith.constant 0 : i32
    %c0_i32_1 = arith.constant 0 : i32
    return %c0_i32, %c0_i32_0 : i32, i32
  }
  func.func @transform_2(%arg0: i32) -> (i32, i32) {
    %c0_i32 = arith.constant 0 : i32
    %c0_i32_0 = arith.constant 0 : i32
    %c0_i32_1 = arith.constant 0 : i32
    return %c0_i32, %c0_i32_0 : i32, i32
  }
  func.func @transform_3(%arg0: i32) -> (i32, i32) {
    %c0_i32 = arith.constant 0 : i32
    %c0_i32_0 = arith.constant 0 : i32
    %c0_i32_1 = arith.constant 0 : i32
    return %c0_i32, %c0_i32_0 : i32, i32
  }
  func.func @transform_4(%arg0: i32) -> (i32, i32) {
    %c0_i32 = arith.constant 0 : i32
    %c0_i32_0 = arith.constant 0 : i32
    %c0_i32_1 = arith.constant 0 : i32
    return %c0_i32, %c0_i32_0 : i32, i32
  }
  func.func @transform_5(%arg0: i32) -> (i32, i32) {
    %c0_i32 = arith.constant 0 : i32
    %c0_i32_0 = arith.constant 0 : i32
    %c0_i32_1 = arith.constant 0 : i32
    return %c0_i32, %c0_i32_0 : i32, i32
  }
  func.func @transform_6(%arg0: i32) -> (i32, i32) {
    %c0_i32 = arith.constant 0 : i32
    %c0_i32_0 = arith.constant 0 : i32
    %c0_i32_1 = arith.constant 0 : i32
    return %c0_i32, %c0_i32_0 : i32, i32
  }
  func.func @transform_7(%arg0: i32) -> (i32, i32) {
    %c0_i32 = arith.constant 0 : i32
    %c0_i32_0 = arith.constant 0 : i32
    return %arg0, %c0_i32 : i32, i32
  }
}

</mosaic_0001>

<llo_original>
// kernel: mlp_subblock_forward.1
$region0: #{mlp_subblock_forward.1}
  #allocation0 [shape = 'u32[]', space=smem, size = 0x4, offset = 0x4, fixed_abs, tag = 'smem constant byte address 0x4 - core index']
  #allocation1 [shape = 'u32[72,128]{1,0:T(1,128)}', space=vmem, size = 0x9000, scoped, tag = 'internal scratch']
  %s0 = inlined_call_operand.vmem [shape: f32[24,64], index: 0, kind: input, shape index: {}]
  %s1 = inlined_call_operand.vmem [shape: f32[1,64], index: 1, kind: input, shape index: {}]
  %s2 = inlined_call_operand.vmem [shape: f32[1,64], index: 2, kind: input, shape index: {}]
  %s3 = inlined_call_operand.vmem [shape: bf16[64,256], index: 3, kind: input, shape index: {}]
  %s4 = inlined_call_operand.vmem [shape: f32[1,256], index: 4, kind: input, shape index: {}]
  %s5 = inlined_call_operand.vmem [shape: bf16[256,64], index: 5, kind: input, shape index: {}]
  %s6 = inlined_call_operand.vmem [shape: f32[1,64], index: 6, kind: input, shape index: {}]
  %s7 = inlined_call_operand.vmem [shape: f32[24,64], index: 7, kind: output, shape index: {}]
  %s8 = sld [smem:[#allocation0]]
  $region61: #{mlp_subblock_forward.1} parent=0
    _
  %s10 = ssub.s32 1, %s8
  %s11 = scalar_select 0, %s10, %s8
  loop: start=0, step=1, limit=5
  $region2: #{mlp_subblock_forward.1} parent=0 // loop_pre_header
    _
  $region3: #{mlp_subblock_forward.1} parent=0 // loop_header
    %s13 = sphi 0, %s17
    %p14 = scmp.ge.s32.totalorder %s13, 5
    %s23 = sphi 0, %s25
    %s26 = sphi 0, %s23
    %s27 = sphi 0, %s26
    %s43 = sphi 0, %s27
    %s47 = sphi 0, %s47
    %s49 = sphi 0, %s47
    %s50 = sphi 0, %s49
    %s64 = sphi 0, %s50
    %s68 = sphi 0, %s68
    %s70 = sphi 0, %s68
    %s71 = sphi 0, %s70
    %s85 = sphi 0, %s71
    %s89 = sphi 0, %s89
    %s91 = sphi 0, %s89
    %s92 = sphi 0, %s91
    %s106 = sphi 0, %s92
    %s110 = sphi 0, %s110
    %s112 = sphi 0, %s110
    %s113 = sphi 0, %s112
    %s127 = sphi 0, %s113
    %s131 = sphi 0, %s131
    %s133 = sphi 0, %s131
    %s134 = sphi 0, %s133
    %s148 = sphi 0, %s134
    %s152 = sphi 0, %s152
    %s154 = sphi 0, %s152
    %s155 = sphi 0, %s154
    %s169 = sphi 0, %s155
    %s175 = sphi 0, %s177
    %s178 = sphi 0, %s175
    %s179 = sphi 0, %s178
    %s195 = sphi 0, %s179
  $region4: #{mlp_subblock_forward.1} parent=0 // loop_header_branch
    %16 = sbr.rel (%p14) target = $region8
  $region5: #{mlp_subblock_forward.1} parent=0 // loop_body
    %s18 = ssub.s32 %s13, 1
    %s19 = ssub.s32 %s13, 2
    %s20 = sadd.s32 %s13, 1
    %s21 = ssub.s32 %s13, %s20
    %p22 = scmp.eq.s32.totalorder %s21, 0
    %s24 = sadd.s32 %s23, 1
    %s25 = scalar_select %p22, %s23, %s24
    %p28 = pneg %p22
    %p29 = scmp.eq.s32.totalorder %s13, 2
    %p30 = por %p28, %p29
    %p31 = scmp.ne.s32.totalorder %s23, %s26
    %p32 = scmp.eq.s32.totalorder %s13, 0
    %p33 = por %p31, %p32
    %p34 = scmp.ne.s32.totalorder %s23, %s26
    %p35 = scmp.eq.s32.totalorder %s18, 2
    %p36 = por %p34, %p35
    %p37 = scmp.ne.s32.totalorder %s26, %s27
    %p38 = scmp.eq.s32.totalorder %s18, 0
    %p39 = por %p37, %p38
    %p40 = scmp.ne.s32.totalorder %s26, %s27
    %p41 = scmp.eq.s32.totalorder %s19, 2
    %p42 = por %p40, %p41
    %p44 = scmp.ne.s32.totalorder %s27, %s43
    %p45 = scmp.eq.s32.totalorder %s19, 0
    %p46 = por %p44, %p45
    %s48 = sadd.s32 %s47, 1
    %p51 = scmp.eq.s32.totalorder %s13, 2
    %p52 = scmp.ne.s32.totalorder %s47, %s49
    %p53 = scmp.eq.s32.totalorder %s13, 0
    %p54 = por %p52, %p53
    %p55 = scmp.ne.s32.totalorder %s47, %s49
    %p56 = scmp.eq.s32.totalorder %s18, 2
    %p57 = por %p55, %p56
    %p58 = scmp.ne.s32.totalorder %s49, %s50
    %p59 = scmp.eq.s32.totalorder %s18, 0
    %p60 = por %p58, %p59
    %p61 = scmp.ne.s32.totalorder %s49, %s50
    %p62 = scmp.eq.s32.totalorder %s19, 2
    %p63 = por %p61, %p62
    %p65 = scmp.ne.s32.totalorder %s50, %s64
    %p66 = scmp.eq.s32.totalorder %s19, 0
    %p67 = por %p65, %p66
    %s69 = sadd.s32 %s68, 1
    %p72 = scmp.eq.s32.totalorder %s13, 2
    %p73 = scmp.ne.s32.totalorder %s68, %s70
    %p74 = scmp.eq.s32.totalorder %s13, 0
    %p75 = por %p73, %p74
    %p76 = scmp.ne.s32.totalorder %s68, %s70
    %p77 = scmp.eq.s32.totalorder %s18, 2
    %p78 = por %p76, %p77
    %p79 = scmp.ne.s32.totalorder %s70, %s71
    %p80 = scmp.eq.s32.totalorder %s18, 0
    %p81 = por %p79, %p80
    %p82 = scmp.ne.s32.totalorder %s70, %s71
    %p83 = scmp.eq.s32.totalorder %s19, 2
    %p84 = por %p82, %p83
    %p86 = scmp.ne.s32.totalorder %s71, %s85
    %p87 = scmp.eq.s32.totalorder %s19, 0
    %p88 = por %p86, %p87
    %s90 = sadd.s32 %s89, 1
    %p93 = scmp.eq.s32.totalorder %s13, 2
    %p94 = scmp.ne.s32.totalorder %s89, %s91
    %p95 = scmp.eq.s32.totalorder %s13, 0
    %p96 = por %p94, %p95
    %p97 = scmp.ne.s32.totalorder %s89, %s91
    %p98 = scmp.eq.s32.totalorder %s18, 2
    %p99 = por %p97, %p98
    %p100 = scmp.ne.s32.totalorder %s91, %s92
    %p101 = scmp.eq.s32.totalorder %s18, 0
    %p102 = por %p100, %p101
    %p103 = scmp.ne.s32.totalorder %s91, %s92
    %p104 = scmp.eq.s32.totalorder %s19, 2
    %p105 = por %p103, %p104
    %p107 = scmp.ne.s32.totalorder %s92, %s106
    %p108 = scmp.eq.s32.totalorder %s19, 0
    %p109 = por %p107, %p108
    %s111 = sadd.s32 %s110, 1
    %p114 = scmp.eq.s32.totalorder %s13, 2
    %p115 = scmp.ne.s32.totalorder %s110, %s112
    %p116 = scmp.eq.s32.totalorder %s13, 0
    %p117 = por %p115, %p116
    %p118 = scmp.ne.s32.totalorder %s110, %s112
    %p119 = scmp.eq.s32.totalorder %s18, 2
    %p120 = por %p118, %p119
    %p121 = scmp.ne.s32.totalorder %s112, %s113
    %p122 = scmp.eq.s32.totalorder %s18, 0
    %p123 = por %p121, %p122
    %p124 = scmp.ne.s32.totalorder %s112, %s113
    %p125 = scmp.eq.s32.totalorder %s19, 2
    %p126 = por %p124, %p125
    %p128 = scmp.ne.s32.totalorder %s113, %s127
    %p129 = scmp.eq.s32.totalorder %s19, 0
    %p130 = por %p128, %p129
    %s132 = sadd.s32 %s131, 1
    %p135 = scmp.eq.s32.totalorder %s13, 2
    %p136 = scmp.ne.s32.totalorder %s131, %s133
    %p137 = scmp.eq.s32.totalorder %s13, 0
    %p138 = por %p136, %p137
    %p139 = scmp.ne.s32.totalorder %s131, %s133
    %p140 = scmp.eq.s32.totalorder %s18, 2
    %p141 = por %p139, %p140
    %p142 = scmp.ne.s32.totalorder %s133, %s134
    %p143 = scmp.eq.s32.totalorder %s18, 0
    %p144 = por %p142, %p143
    %p145 = scmp.ne.s32.totalorder %s133, %s134
    %p146 = scmp.eq.s32.totalorder %s19, 2
    %p147 = por %p145, %p146
    %p149 = scmp.ne.s32.totalorder %s134, %s148
    %p150 = scmp.eq.s32.totalorder %s19, 0
    %p151 = por %p149, %p150
    %s153 = sadd.s32 %s152, 1
    %p156 = scmp.eq.s32.totalorder %s13, 2
    %p157 = scmp.ne.s32.totalorder %s152, %s154
    %p158 = scmp.eq.s32.totalorder %s13, 0
    %p159 = por %p157, %p158
    %p160 = scmp.ne.s32.totalorder %s152, %s154
    %p161 = scmp.eq.s32.totalorder %s18, 2
    %p162 = por %p160, %p161
    %p163 = scmp.ne.s32.totalorder %s154, %s155
    %p164 = scmp.eq.s32.totalorder %s18, 0
    %p165 = por %p163, %p164
    %p166 = scmp.ne.s32.totalorder %s154, %s155
    %p167 = scmp.eq.s32.totalorder %s19, 2
    %p168 = por %p166, %p167
    %p170 = scmp.ne.s32.totalorder %s155, %s169
    %p171 = scmp.eq.s32.totalorder %s19, 0
    %p172 = por %p170, %p171
    %s173 = ssub.s32 %s13, %s20
    %p174 = scmp.eq.s32.totalorder %s173, 0
    %s176 = sadd.s32 %s175, 1
    %s177 = scalar_select %p174, %s175, %s176
    %p180 = pneg %p174
    %p181 = scmp.eq.s32.totalorder %s13, 2
    %p182 = por %p180, %p181
    %p183 = scmp.ne.s32.totalorder %s175, %s178
    %p184 = scmp.eq.s32.totalorder %s13, 0
    %p185 = por %p183, %p184
    %p186 = scmp.ne.s32.totalorder %s175, %s178
    %p187 = scmp.eq.s32.totalorder %s18, 2
    %p188 = por %p186, %p187
    %p189 = scmp.ne.s32.totalorder %s178, %s179
    %p190 = scmp.eq.s32.totalorder %s18, 0
    %p191 = por %p189, %p190
    %p192 = scmp.ne.s32.totalorder %s178, %s179
    %p193 = scmp.eq.s32.totalorder %s19, 2
    %p194 = por %p192, %p193
    %p196 = scmp.ne.s32.totalorder %s179, %s195
    %p197 = scmp.eq.s32.totalorder %s19, 0
    %p198 = por %p196, %p197
    %p199 = scmp.le.s32.totalorder 1, %s13
    %p200 = scmp.lt.s32.totalorder %s13, 4
    %p201 = pnand %p199, %p200
    %p202 = pneg %p201
    // Predicated region
    $region9: #{mlp_subblock_forward.1} parent=5 // pred_check
      _
    $region10: #{mlp_subblock_forward.1} parent=5 // pred_check_branch
      %204 = sbr.rel (%p201) target = $region12
    $region11: #{mlp_subblock_forward.1} parent=5 // pred_region
      %s205 = ssub.s32 %s13, 1
      // Predicated region
      $region13: #{mlp_subblock_forward.1} parent=11 // pred_check
        %p206 = pneg %p60
      $region14: #{mlp_subblock_forward.1} parent=11 // pred_check_branch
        %208 = sbr.rel (%p206) target = $region16
      $region15: #{mlp_subblock_forward.1} parent=11 // pred_region
        _
      $region16: #{mlp_subblock_forward.1} parent=11 // pred_fallthru
        _
      // Predicated region
      $region17: #{mlp_subblock_forward.1} parent=11 // pred_check
        %p209 = pneg %p81
      $region18: #{mlp_subblock_forward.1} parent=11 // pred_check_branch
        %211 = sbr.rel (%p209) target = $region20
      $region19: #{mlp_subblock_forward.1} parent=11 // pred_region
        _
      $region20: #{mlp_subblock_forward.1} parent=11 // pred_fallthru
        _
      // Predicated region
      $region21: #{mlp_subblock_forward.1} parent=11 // pred_check
        %p212 = pneg %p102
      $region22: #{mlp_subblock_forward.1} parent=11 // pred_check_branch
        %214 = sbr.rel (%p212) target = $region24
      $region23: #{mlp_subblock_forward.1} parent=11 // pred_region
        _
      $region24: #{mlp_subblock_forward.1} parent=11 // pred_fallthru
        _
      // Predicated region
      $region25: #{mlp_subblock_forward.1} parent=11 // pred_check
        %p215 = pneg %p123
      $region26: #{mlp_subblock_forward.1} parent=11 // pred_check_branch
        %217 = sbr.rel (%p215) target = $region28
      $region27: #{mlp_subblock_forward.1} parent=11 // pred_region
        _
      $region28: #{mlp_subblock_forward.1} parent=11 // pred_fallthru
        _
      // Predicated region
      $region29: #{mlp_subblock_forward.1} parent=11 // pred_check
        %p218 = pneg %p144
      $region30: #{mlp_subblock_forward.1} parent=11 // pred_check_branch
        %220 = sbr.rel (%p218) target = $region32
      $region31: #{mlp_subblock_forward.1} parent=11 // pred_region
        _
      $region32: #{mlp_subblock_forward.1} parent=11 // pred_fallthru
        _
      // Predicated region
      $region33: #{mlp_subblock_forward.1} parent=11 // pred_check
        %p221 = pneg %p165
      $region34: #{mlp_subblock_forward.1} parent=11 // pred_check_branch
        %223 = sbr.rel (%p221) target = $region36
      $region35: #{mlp_subblock_forward.1} parent=11 // pred_region
        _
      $region36: #{mlp_subblock_forward.1} parent=11 // pred_fallthru
        _
    $region12: #{mlp_subblock_forward.1} parent=5 // pred_fallthru
      _
    %p224 = scmp.lt.s32.totalorder %s13, 3
    // Predicated region
    $region37: #{mlp_subblock_forward.1} parent=5 // pred_check
      %p225 = pneg %p224
    $region38: #{mlp_subblock_forward.1} parent=5 // pred_check_branch
      %227 = sbr.rel (%p225) target = $region40
    $region39: #{mlp_subblock_forward.1} parent=5 // pred_region
      // Predicated region
      $region41: #{mlp_subblock_forward.1} parent=39 // pred_check
        %p228 = pneg %p33
      $region42: #{mlp_subblock_forward.1} parent=39 // pred_check_branch
        %230 = sbr.rel (%p228) target = $region44
      $region43: #{mlp_subblock_forward.1} parent=39 // pred_region
        %p231 = scmp.lt.s32.totalorder %s13, 2
        %s232 = scalar_select %p231, %s13, 2
        %s233 = smul.addr %s232, 8
        %s234 = scalar_lea.vmem %s0, %s233
      $region44: #{mlp_subblock_forward.1} parent=39 // pred_fallthru
        _
    $region40: #{mlp_subblock_forward.1} parent=5 // pred_fallthru
      _
    %p235 = scmp.le.s32.totalorder 1, %s13
    %p236 = scmp.lt.s32.totalorder %s13, 4
    %p237 = pnand %p235, %p236
    %p238 = pneg %p237
    // Predicated region
    $region45: #{mlp_subblock_forward.1} parent=5 // pred_check
      _
    $region46: #{mlp_subblock_forward.1} parent=5 // pred_check_branch
      %240 = sbr.rel (%p237) target = $region48
    $region47: #{mlp_subblock_forward.1} parent=5 // pred_region
      %s241 = ssub.s32 %s13, 1
      %p242 = scmp.lt.s32.totalorder %s18, 2
      %s243 = scalar_select %p242, %s18, 2
      %s244 = smul.addr %s243, 8
      %s245 = scalar_lea.vmem %s0, %s244
      %p246 = pneg %p39
      %p247 = pneg %p36
      %p248 = pneg %p60
      %p249 = pneg %p57
      %p250 = pneg %p81
      %p251 = pneg %p78
      %p252 = pneg %p102
      %p253 = pneg %p99
      %p254 = pneg %p123
      %p255 = pneg %p120
      %p256 = pneg %p144
      %p257 = pneg %p141
      %p258 = pneg %p165
      %p259 = pneg %p162
      %p260 = pneg %p191
      %p261 = pneg %p188
      %p262 = scmp.lt.s32.totalorder %s18, 2
      %s263 = scalar_select %p262, %s18, 2
      %s264 = smul.addr %s263, 8
      %s265 = scalar_lea.vmem %s7, %s264
      %p266 = scmp.lt.s32.totalorder %s18, 2
      %s267 = scalar_select %p266, %s18, 2
      %s268 = smul.addr %s267, 8
      %s269 = scalar_lea.vmem %s0, %s268
      %p270 = scmp.lt.s32.totalorder %s18, 2
      %s271 = scalar_select %p270, %s18, 2
      %s272 = smul.addr %s271, 8
      %s273 = scalar_lea.vmem %s7, %s272
      %v275 = vld [vmem:[%s269] sm:$0xff]
      %v276 = vld [vmem:[%s1] sm:$0x1]
      %v277 = vld [vmem:[%s2] sm:$0x1]
      %vm278 = vcmask 523264
      %v279 = vsel %vm278, %v275, 0.0
      %280 = vadd.xlane.f32.xlu0 %v279
      %v281 = vpop.xlane.xlu0 %280
      %v282 = vrcp.pop 64.0
      %v283 = vmul.f32 64.0, %v282
      %v284 = vsub.f32 1.0, %v283
      %v285 = vmul.f32 %v282, %v284
      %v286 = vadd.f32 %v282, %v285
      %vm287 = vweird.f32 %v282
      %v288 = vsel %vm287, %v282, %v286
      %v289 = vmul.f32 %v281, %v288
      %v290 = vsub.f32 %v275, %v289
      %v291 = vmul.f32 %v290, %v290
      %v292 = vsel %vm278, %v291, 0.0
      %293 = vadd.xlane.f32.xlu0 %v292
      %v294 = vpop.xlane.xlu0 %293
      %v295 = vmul.f32 %v294, %v288
      %v296 = vadd.f32 %v295, 1e-05
      %v297 = vrsqrt.pop %v296
      %v298 = vmul.f32 %v297, %v296
      %v299 = vmul.f32 %v298, %v297
      %v300 = vmul.f32 0.5, %v299
      %v301 = vsub.f32 1.5, %v300
      %v302 = vmul.f32 %v297, %v301
      %vm303 = vweird.f32 %v296
      %vm304 = vweird.f32 %v297
      %vm305 = vmor %vm303, %vm304
      %v306 = vsel %vm305, %v297, %v302
      %v307 = vmul.f32 %v290, %v306
      %v309 = vperm.slane %v276, 0
      %v311 = vmul.f32 %v307, %v309
      %v313 = vperm.slane %v277, 0
      %v315 = vadd.f32 %v311, %v313
      %v316 = vpack.c.bf16 %v315, %v315
      %v317 = vld [vmem:[%s3] sm:$0xff]
      %v318 = vld [vmem:[%s3 + $0x8] sm:$0xff]
      %v319 = vld [vmem:[%s3 + $0x10] sm:$0xff]
      %v320 = vld [vmem:[%s3 + $0x18] sm:$0xff]
      %v321 = vld [vmem:[%s3 + $0x20] sm:$0xff]
      %v322 = vld [vmem:[%s3 + $0x28] sm:$0xff]
      %v323 = vld [vmem:[%s3 + $0x30] sm:$0xff]
      %v324 = vld [vmem:[%s3 + $0x38] sm:$0xff]
      %v325 = vld [vmem:[%s4] sm:$0x3]
      %v327 = vperm.slane %v325, 0
      %v328 = vperm.slane %v325, 1
      %v339 = vunpack.c.l.b16 %v317
      %v340 = vunpack.c.h.b16 %v317
      %v341 = vunpack.c.l.b16 %v318
      %v342 = vunpack.c.h.b16 %v318
      %v343 = vunpack.c.l.b16 %v319
      %v344 = vunpack.c.h.b16 %v319
      %v345 = vunpack.c.l.b16 %v320
      %v346 = vunpack.c.h.b16 %v320
      %v347 = vunpack.c.l.b16 %v321
      %v348 = vunpack.c.h.b16 %v321
      %v349 = vunpack.c.l.b16 %v322
      %v350 = vunpack.c.h.b16 %v322
      %v351 = vunpack.c.l.b16 %v323
      %v352 = vunpack.c.h.b16 %v323
      %v353 = vunpack.c.l.b16 %v324
      %v354 = vunpack.c.h.b16 %v324
      %v355 = vpack.c.b16 %v341, %v339
      %v356 = vpack.c.b16 %v342, %v340
      %v357 = vpack.c.b16 %v345, %v343
      %v358 = vpack.c.b16 %v346, %v344
      %v359 = vpack.c.b16 %v349, %v347
      %v360 = vpack.c.b16 %v350, %v348
      %v361 = vpack.c.b16 %v353, %v351
      %v362 = vpack.c.b16 %v354, %v352
      %v372 = vsel %vm278, %v316, 0
      %374 = vmatpush.bf16.msra.mxu0 0
      %375 = vmatpush.bf16.msra.mxu0 0
      %376 = vmatpush.bf16.msra.mxu0 0
      %377 = vmatpush.bf16.msra.mxu0 0
      %378 = vmatpush.bf16.msra.mxu0 %v361
      %379 = vmatpush.bf16.msra.mxu0 %v359
      %380 = vmatpush.bf16.msra.mxu0 %v357
      %381 = vmatpush.bf16.msra.mxu0 %v355
      %382 = vmatmul.bf16.gmra.mxu0 %v372
      %v383 = vpop.f32.mrf.mxu0
      %v384 = vadd.f32 %v327, %v383
      %v385 = vpop.f32.mrf.mxu0
      %386 = vdwg.mxu0
      %387 = vmatpush.bf16.msra.mxu0 0
      %388 = vmatpush.bf16.msra.mxu0 0
      %389 = vmatpush.bf16.msra.mxu0 0
      %390 = vmatpush.bf16.msra.mxu0 0
      %391 = vmatpush.bf16.msra.mxu0 %v362
      %392 = vmatpush.bf16.msra.mxu0 %v360
      %393 = vmatpush.bf16.msra.mxu0 %v358
      %394 = vmatpush.bf16.msra.mxu0 %v356
      %395 = vmatmul.bf16.gmra.mxu0 %v372
      %v396 = vpop.f32.mrf.mxu0
      %v397 = vadd.f32 %v328, %v396
      %v398 = vpop.f32.mrf.mxu0
      %399 = vdwg.mxu0
      %v400 = vmul.f32 %v384, 0.5
      %v401 = vmul.f32 %v397, 0.5
      %v402 = vmul.f32 %v384, 0.70710677
      %v403 = vmul.f32 %v397, 0.70710677
      %v404 = vmul.f32 %v402, %v402
      %v405 = vmin.f32 16.0, %v404
      %v406 = vmul.f32 %v405, 2.1237322e-06
      %v407 = vadd.f32 %v406, 0.00028619796
      %v408 = vmul.f32 %v405, %v407
      %v409 = vadd.f32 %v408, 0.0036580483
      %v410 = vmul.f32 %v405, %v409
      %v411 = vadd.f32 %v410, 0.05243302
      %v412 = vmul.f32 %v405, %v411
      %v413 = vadd.f32 %v412, 0.18741608
      %v414 = vmul.f32 %v405, %v413
      %v415 = vadd.f32 %v414, 1.1283791
      %v416 = vmul.f32 %v402, %v415
      %v417 = vmul.f32 %v405, 3.8918573e-05
      %v418 = vadd.f32 %v417, 0.001143296
      %v419 = vmul.f32 %v405, %v418
      %v420 = vadd.f32 %v419, 0.014752088
      %v421 = vmul.f32 %v405, %v420
      %v422 = vadd.f32 %v421, 0.112945676
      %v423 = vmul.f32 %v405, %v422
      %v424 = vadd.f32 %v423, 0.4994258
      %v425 = vmul.f32 %v405, %v424
      %v426 = vadd.f32 %v425, 1.0
      %v427 = vrcp.pop %v426
      %v428 = vmul.f32 %v426, %v427
      %v429 = vsub.f32 1.0, %v428
      %v430 = vmul.f32 %v427, %v429
      %v431 = vadd.f32 %v427, %v430
      %vm432 = vweird.f32 %v426
      %vm433 = vweird.f32 %v427
      %vm434 = vmor %vm432, %vm433
      %v435 = vsel %vm434, %v427, %v431
      %v436 = vand.u32 2147483647, %v426
      %vm437 = vcmp.eq.f32.partialorder %v436, 8.507059e+37
      %v438 = vand.u32 %v426, 2147483648
      %v439 = vor.u32 1.1754944e-38, %v438
      %v440 = vsel %vm437, %v439, %v435
      %v441 = vmul.f32 %v416, %v440
      %v442 = vmin.f32 %v441, 1.0
      %v443 = vmax.f32 %v442, -1.0
      %v444 = vmul.f32 %v403, %v403
      %v445 = vmin.f32 16.0, %v444
      %v446 = vmul.f32 %v445, 2.1237322e-06
      %v447 = vadd.f32 %v446, 0.00028619796
      %v448 = vmul.f32 %v445, %v447
      %v449 = vadd.f32 %v448, 0.0036580483
      %v450 = vmul.f32 %v445, %v449
      %v451 = vadd.f32 %v450, 0.05243302
      %v452 = vmul.f32 %v445, %v451
      %v453 = vadd.f32 %v452, 0.18741608
      %v454 = vmul.f32 %v445, %v453
      %v455 = vadd.f32 %v454, 1.1283791
      %v456 = vmul.f32 %v403, %v455
      %v457 = vmul.f32 %v445, 3.8918573e-05
      %v458 = vadd.f32 %v457, 0.001143296
      %v459 = vmul.f32 %v445, %v458
      %v460 = vadd.f32 %v459, 0.014752088
      %v461 = vmul.f32 %v445, %v460
      %v462 = vadd.f32 %v461, 0.112945676
      %v463 = vmul.f32 %v445, %v462
      %v464 = vadd.f32 %v463, 0.4994258
      %v465 = vmul.f32 %v445, %v464
      %v466 = vadd.f32 %v465, 1.0
      %v467 = vrcp.pop %v466
      %v468 = vmul.f32 %v466, %v467
      %v469 = vsub.f32 1.0, %v468
      %v470 = vmul.f32 %v467, %v469
      %v471 = vadd.f32 %v467, %v470
      %vm472 = vweird.f32 %v466
      %vm473 = vweird.f32 %v467
      %vm474 = vmor %vm472, %vm473
      %v475 = vsel %vm474, %v467, %v471
      %v476 = vand.u32 2147483647, %v466
      %vm477 = vcmp.eq.f32.partialorder %v476, 8.507059e+37
      %v478 = vand.u32 %v466, 2147483648
      %v479 = vor.u32 1.1754944e-38, %v478
      %v480 = vsel %vm477, %v479, %v475
      %v481 = vmul.f32 %v456, %v480
      %v482 = vmin.f32 %v481, 1.0
      %v483 = vmax.f32 %v482, -1.0
      %v484 = vadd.f32 %v443, 1.0
      %v485 = vadd.f32 %v483, 1.0
      %v486 = vmul.f32 %v400, %v484
      %v487 = vmul.f32 %v401, %v485
      %v488 = vpack.c.bf16 %v486, %v486
      %v489 = vpack.c.bf16 %v487, %v487
      %v490 = vld [vmem:[%s5] sm:$0xf]
      %v491 = vld [vmem:[%s5 + $0x4] sm:$0xf]
      %v492 = vld [vmem:[%s5 + $0x8] sm:$0xf]
      %v493 = vld [vmem:[%s5 + $0xc] sm:$0xf]
      %v494 = vld [vmem:[%s5 + $0x10] sm:$0xf]
      %v495 = vld [vmem:[%s5 + $0x14] sm:$0xf]
      %v496 = vld [vmem:[%s5 + $0x18] sm:$0xf]
      %v497 = vld [vmem:[%s5 + $0x1c] sm:$0xf]
      %v498 = vld [vmem:[%s5 + $0x20] sm:$0xf]
      %v499 = vld [vmem:[%s5 + $0x24] sm:$0xf]
      %v500 = vld [vmem:[%s5 + $0x28] sm:$0xf]
      %v501 = vld [vmem:[%s5 + $0x2c] sm:$0xf]
      %v502 = vld [vmem:[%s5 + $0x30] sm:$0xf]
      %v503 = vld [vmem:[%s5 + $0x34] sm:$0xf]
      %v504 = vld [vmem:[%s5 + $0x38] sm:$0xf]
      %v505 = vld [vmem:[%s5 + $0x3c] sm:$0xf]
      %v506 = vld [vmem:[%s5 + $0x40] sm:$0xf]
      %v507 = vld [vmem:[%s5 + $0x44] sm:$0xf]
      %v508 = vld [vmem:[%s5 + $0x48] sm:$0xf]
      %v509 = vld [vmem:[%s5 + $0x4c] sm:$0xf]
      %v510 = vld [vmem:[%s5 + $0x50] sm:$0xf]
      %v511 = vld [vmem:[%s5 + $0x54] sm:$0xf]
      %v512 = vld [vmem:[%s5 + $0x58] sm:$0xf]
      %v513 = vld [vmem:[%s5 + $0x5c] sm:$0xf]
      %v514 = vld [vmem:[%s5 + $0x60] sm:$0xf]
      %v515 = vld [vmem:[%s5 + $0x64] sm:$0xf]
      %v516 = vld [vmem:[%s5 + $0x68] sm:$0xf]
      %v517 = vld [vmem:[%s5 + $0x6c] sm:$0xf]
      %v518 = vld [vmem:[%s5 + $0x70] sm:$0xf]
      %v519 = vld [vmem:[%s5 + $0x74] sm:$0xf]
      %v520 = vld [vmem:[%s5 + $0x78] sm:$0xf]
      %v521 = vld [vmem:[%s5 + $0x7c] sm:$0xf]
      %v522 = vld [vmem:[%s6] sm:$0x1]
      %v524 = vperm.slane %v522, 0
      %v558 = vunpack.c.l.b16 %v490
      %v559 = vunpack.c.l.b16 %v491
      %v560 = vunpack.c.l.b16 %v492
      %v561 = vunpack.c.l.b16 %v493
      %v562 = vunpack.c.l.b16 %v494
      %v563 = vunpack.c.l.b16 %v495
      %v564 = vunpack.c.l.b16 %v496
      %v565 = vunpack.c.l.b16 %v497
      %v566 = vunpack.c.l.b16 %v498
      %v567 = vunpack.c.l.b16 %v499
      %v568 = vunpack.c.l.b16 %v500
      %v569 = vunpack.c.l.b16 %v501
      %v570 = vunpack.c.l.b16 %v502
      %v571 = vunpack.c.l.b16 %v503
      %v572 = vunpack.c.l.b16 %v504
      %v573 = vunpack.c.l.b16 %v505
      %v574 = vunpack.c.l.b16 %v506
      %v575 = vunpack.c.l.b16 %v507
      %v576 = vunpack.c.l.b16 %v508
      %v577 = vunpack.c.l.b16 %v509
      %v578 = vunpack.c.l.b16 %v510
      %v579 = vunpack.c.l.b16 %v511
      %v580 = vunpack.c.l.b16 %v512
      %v581 = vunpack.c.l.b16 %v513
      %v582 = vunpack.c.l.b16 %v514
      %v583 = vunpack.c.l.b16 %v515
      %v584 = vunpack.c.l.b16 %v516
      %v585 = vunpack.c.l.b16 %v517
      %v586 = vunpack.c.l.b16 %v518
      %v587 = vunpack.c.l.b16 %v519
      %v588 = vunpack.c.l.b16 %v520
      %v589 = vunpack.c.l.b16 %v521
      %v590 = vpack.c.b16 %v559, %v558
      %v591 = vpack.c.b16 %v561, %v560
      %v592 = vpack.c.b16 %v563, %v562
      %v593 = vpack.c.b16 %v565, %v564
      %v594 = vpack.c.b16 %v567, %v566
      %v595 = vpack.c.b16 %v569, %v568
      %v596 = vpack.c.b16 %v571, %v570
      %v597 = vpack.c.b16 %v573, %v572
      %v598 = vpack.c.b16 %v575, %v574
      %v599 = vpack.c.b16 %v577, %v576
      %v600 = vpack.c.b16 %v579, %v578
      %v601 = vpack.c.b16 %v581, %v580
      %v602 = vpack.c.b16 %v583, %v582
      %v603 = vpack.c.b16 %v585, %v584
      %v604 = vpack.c.b16 %v587, %v586
      %v605 = vpack.c.b16 %v589, %v588
      %622 = vmatpush.bf16.msra.mxu0 %v597
      %623 = vmatpush.bf16.msra.mxu0 %v596
      %624 = vmatpush.bf16.msra.mxu0 %v595
      %625 = vmatpush.bf16.msra.mxu0 %v594
      %626 = vmatpush.bf16.msra.mxu0 %v593
      %627 = vmatpush.bf16.msra.mxu0 %v592
      %628 = vmatpush.bf16.msra.mxu0 %v591
      %629 = vmatpush.bf16.msra.mxu0 %v590
      %630 = vmatmul.bf16.gmra.mxu0 %v488
      %v631 = vpop.f32.mrf.mxu0
      %v632 = vadd.f32 %v524, %v631
      %v633 = vpop.f32.mrf.mxu0
      %634 = vdwg.mxu0
      %635 = vmatpush.bf16.msra.mxu0 %v605
      %636 = vmatpush.bf16.msra.mxu0 %v604
      %637 = vmatpush.bf16.msra.mxu0 %v603
      %638 = vmatpush.bf16.msra.mxu0 %v602
      %639 = vmatpush.bf16.msra.mxu0 %v601
      %640 = vmatpush.bf16.msra.mxu0 %v600
      %641 = vmatpush.bf16.msra.mxu0 %v599
      %642 = vmatpush.bf16.msra.mxu0 %v598
      %643 = vmatmul.bf16.gmra.mxu0 %v489
      %v644 = vpop.f32.mrf.mxu0
      %v645 = vadd.f32 %v632, %v644
      %v646 = vpop.f32.mrf.mxu0
      %647 = vdwg.mxu0
      %648 = vst.msk [vmem:[%s273] sm:$0xff] %vm278, %v645
      %p649 = scmp.lt.s32.totalorder %s18, 2
      %s650 = scalar_select %p649, %s18, 2
      %s651 = smul.addr %s650, 8
      %s652 = scalar_lea.vmem %s7, %s651
      // Predicated region
      $region49: #{mlp_subblock_forward.1} parent=47 // pred_check
        %p653 = pneg %p188
      $region50: #{mlp_subblock_forward.1} parent=47 // pred_check_branch
        %655 = sbr.rel (%p653) target = $region52
      $region51: #{mlp_subblock_forward.1} parent=47 // pred_region
        _
      $region52: #{mlp_subblock_forward.1} parent=47 // pred_fallthru
        _
    $region48: #{mlp_subblock_forward.1} parent=5 // pred_fallthru
      _
    %p656 = scmp.le.s32.totalorder 2, %s13
    // Predicated region
    $region53: #{mlp_subblock_forward.1} parent=5 // pred_check
      %p657 = pneg %p656
    $region54: #{mlp_subblock_forward.1} parent=5 // pred_check_branch
      %659 = sbr.rel (%p657) target = $region56
    $region55: #{mlp_subblock_forward.1} parent=5 // pred_region
      %s660 = ssub.s32 %s13, 2
      // Predicated region
      $region57: #{mlp_subblock_forward.1} parent=55 // pred_check
        %p661 = pneg %p194
      $region58: #{mlp_subblock_forward.1} parent=55 // pred_check_branch
        %663 = sbr.rel (%p661) target = $region60
      $region59: #{mlp_subblock_forward.1} parent=55 // pred_region
        %p664 = scmp.lt.s32.totalorder %s19, 2
        %s665 = scalar_select %p664, %s19, 2
        %s666 = smul.addr %s665, 8
        %s667 = scalar_lea.vmem %s7, %s666
      $region60: #{mlp_subblock_forward.1} parent=55 // pred_fallthru
        _
    $region56: #{mlp_subblock_forward.1} parent=5 // pred_fallthru
      _
  $region6: #{mlp_subblock_forward.1} parent=0 // loop_footer
    %s17 = sadd.s32 1, %s13
  $region7: #{mlp_subblock_forward.1} parent=0 // loop_footer_branch
    %12 = sbr.rel target = $region3
  $region8: #{mlp_subblock_forward.1} parent=0 // loop_exit
    _

</llo_original>
